<compile_context>
chip_gen: v7x
topology: tpu7x:2x2x1
jax: 0.10.0
libtpu: 0.0.40
codegen_flags: <defaults>
</compile_context>

<pallas_src>
import jax
import jax.numpy as jnp
from jax.experimental import pallas as pl
from jax.experimental.pallas import tpu as pltpu

_LANE = 128          # TPU lane width (last-dim vreg extent)
_SUBLANE = 8         # TPU sublane width (second-to-last-dim vreg extent, f32)
_MIB = 1024 * 1024
_VMEM_BUDGET = 24 * _MIB   # budget for our accounted per-tile working set


def _round_up(n, m):
    return ((n + m - 1) // m) * m


# ----------------------------------------------------------------------------
# Kernels
# ----------------------------------------------------------------------------
def _mlp_tail(h1_pre, b1_ref, w2_ref, b2_ref, wl_ref, bl_ref, out_ref):
    """Shared backbone tail: bias+ReLU -> bf16 matmul (f32 acc) + bias + ReLU
    -> Linear(H, 1) as VPU multiply + XLU lane reduce -> lane-dense store."""
    h1 = jnp.maximum(h1_pre + b1_ref[...], 0.0)                        # (TB, Hp) f32
    h2 = jnp.dot(h1.astype(jnp.bfloat16), w2_ref[...],
                 preferred_element_type=jnp.float32) + b2_ref[...]
    h2 = jnp.maximum(h2, 0.0)                                          # (TB, Hp) f32
    # Final Linear(H, 1): elementwise * weight row + lane reduction instead of
    # a degenerate N=1 MXU matmul. bl is a true scalar living in SMEM.
    v = jnp.sum(h2 * wl_ref[...], axis=-1) + bl_ref[0, 0]              # (TB,)
    out_ref[...] = v.reshape(1, 1, -1)                                 # lane-dense (1,1,TB)


def _critic_kernel(obs_ref, act_ref, w1o_ref, w1a_ref, b1_ref,
                   w2_ref, b2_ref, wl_ref, bl_ref, out_ref):
    # Split first matmul fuses away the obs/actions concat; both partial dots
    # accumulate in f32 (equivalent to concat-then-matmul).
    h1_pre = jnp.dot(obs_ref[...].astype(jnp.bfloat16), w1o_ref[...],
                     preferred_element_type=jnp.float32)
    h1_pre = h1_pre + jnp.dot(act_ref[...].astype(jnp.bfloat16), w1a_ref[...],
                              preferred_element_type=jnp.float32)
    _mlp_tail(h1_pre, b1_ref, w2_ref, b2_ref, wl_ref, bl_ref, out_ref)


def _critic_kernel_obs_only(obs_ref, w1o_ref, b1_ref,
                            w2_ref, b2_ref, wl_ref, bl_ref, out_ref):
    h1_pre = jnp.dot(obs_ref[...].astype(jnp.bfloat16), w1o_ref[...],
                     preferred_element_type=jnp.float32)
    _mlp_tail(h1_pre, b1_ref, w2_ref, b2_ref, wl_ref, bl_ref, out_ref)


# ----------------------------------------------------------------------------
# Parameters
# ----------------------------------------------------------------------------
def init_params(key, in_dim, hidden):
    """Deterministic logical parameters (PyTorch-equivalent shapes, unpadded f32)."""
    k1, k2, k3, k4, k5, k6 = jax.random.split(key, 6)
    scale = 0.1
    w1 = scale * jax.random.normal(k1, (in_dim, hidden), jnp.float32)
    b1 = scale * jax.random.normal(k2, (hidden,), jnp.float32)
    w2 = scale * jax.random.normal(k3, (hidden, hidden), jnp.float32)
    b2 = scale * jax.random.normal(k4, (hidden,), jnp.float32)
    wl = scale * jax.random.normal(k5, (hidden, 1), jnp.float32)   # last: Linear(H, 1)
    bl = scale * jax.random.normal(k6, (1,), jnp.float32)
    return (w1, b1, w2, b2, wl, bl)


def prepare_params(params, obs_dim, act_dim=0, lane=_LANE):
    """Zero-pad hidden (lane) dim to a multiple of 128, split W1 by input, and
    cast the MXU weights to bf16. Padding is exact: padded b1/b2/wl entries are
    0 => padded hidden activations are relu(0) = 0 => contribute nothing."""
    w1, b1, w2, b2, wl, bl = params
    d_in, h = w1.shape
    assert d_in == obs_dim + act_dim, "param in_dim must equal obs_dim + act_dim"
    hp = _round_up(h, lane)
    ph = hp - h

    w1p = jnp.pad(w1, ((0, 0), (0, ph))).astype(jnp.bfloat16)          # MXU operand
    b1p = jnp.pad(b1.reshape(1, h), ((0, 0), (0, ph)))                 # f32
    w2p = jnp.pad(w2, ((0, ph), (0, ph))).astype(jnp.bfloat16)         # MXU operand
    b2p = jnp.pad(b2.reshape(1, h), ((0, 0), (0, ph)))                 # f32
    wlp = jnp.pad(wl.reshape(1, h), ((0, 0), (0, ph)))                 # f32 row (VPU reduce)
    blp = bl.reshape(1, 1)                                             # f32 scalar -> SMEM

    if act_dim > 0:
        w1o, w1a = w1p[:obs_dim], w1p[obs_dim:]
    else:
        w1o, w1a = w1p, None
    return (w1o, w1a, b1p, w2p, b2p, wlp, blp)


# ----------------------------------------------------------------------------
# Tile / VMEM sizing
# ----------------------------------------------------------------------------
def _tile_and_vmem(B, obs_dim, act_dim, hp, block_b):
    """Pick the batch tile (multiple of 8, as large as the VMEM budget allows)
    and an explicit scoped-VMEM limit that is safe on v5e/v6e/v7x."""
    d_in = obs_dim + act_dim

    def working_set(t):
        io = 2 * t * d_in * 4 + 2 * t * 4                    # double-buffered I/O tiles (f32)
        wgt = 2 * (d_in * hp * 2 + hp * hp * 2 + 3 * hp * 4)  # resident weights, 2 buffers
        inter = 4 * t * hp * 4                                # generous f32 intermediates
        return io + wgt + inter

    tb = _round_up(max(1, min(block_b, B)), _SUBLANE)
    while working_set(tb) > _VMEM_BUDGET and tb > 8 * _SUBLANE:
        tb = _round_up(max(tb // 2, 8 * _SUBLANE), _SUBLANE)

    # Floor 32 MiB (>= default scoped limit everywhere), cap 56 MiB (< v7x's
    # 64 MiB physical VMEM), 2x margin over our accounted working set.
    vmem_limit = int(min(max(2 * working_set(tb), 32 * _MIB), 56 * _MIB))
    return tb, vmem_limit


# ----------------------------------------------------------------------------
# Forward
# ----------------------------------------------------------------------------
def critic_forward(obs, padded_params, actions=None, block_b=2048, core_parallel=False):
    """Pallas-backed Critic.forward.

    obs:     (B, OBS) float32
    actions: optional (B, ...) -> flattened to (B, ACT); the concat is fused
             into the split first-layer matmul inside the kernel.
    core_parallel: set True on v7x (2 TensorCores/chip) to shard the batch
             grid across cores; leave False on single-TC chips (v5e/v6e).
    returns: (B, 1) float32
    """
    obs = obs.astype(jnp.float32)
    B, obs_dim = obs.shape
    has_act = actions is not None
    if has_act:
        actions = actions.astype(jnp.float32).reshape(B, -1)
        act_dim = actions.shape[1]
    else:
        act_dim = 0

    w1o, w1a, b1, w2, b2, wl_row, bl = padded_params
    hp = w1o.shape[1]

    tb, vmem_limit = _tile_and_vmem(B, obs_dim, act_dim, hp, block_b)
    num_tiles = pl.cdiv(B, tb)
    grid = (num_tiles,)
    # No wrapper-side jnp.pad: the boundary tile reads undefined rows (Pallas
    # clamps the DMA; rows are independent) and their outputs are sliced off.

    # Weights/biases: constant block index across the batch grid => VMEM-resident,
    # DMA'd once. (pl.Buffered(1) would halve their buffer footprint; negligible
    # at Hp=128, so the default pipeline is kept.)
    def _resident(arr):
        return pl.BlockSpec(arr.shape, lambda i: (0,) * arr.ndim)

    smem_scalar = pl.BlockSpec(memory_space=pltpu.MemorySpace.SMEM)   # bl (1,1)

    if has_act:
        kernel = _critic_kernel
        inputs = (obs, actions, w1o, w1a, b1, w2, b2, wl_row, bl)
        in_specs = [
            pl.BlockSpec((tb, obs_dim), lambda i: (i, 0)),
            pl.BlockSpec((tb, act_dim), lambda i: (i, 0)),
            _resident(w1o), _resident(w1a), _resident(b1),
            _resident(w2), _resident(b2), _resident(wl_row),
            smem_scalar,
        ]
    else:
        kernel = _critic_kernel_obs_only
        inputs = (obs, w1o, b1, w2, b2, wl_row, bl)
        in_specs = [
            pl.BlockSpec((tb, obs_dim), lambda i: (i, 0)),
            _resident(w1o), _resident(b1),
            _resident(w2), _resident(b2), _resident(wl_row),
            smem_scalar,
        ]

    d_in = obs_dim + act_dim
    weight_bytes = sum(int(a.size) * a.dtype.itemsize
                       for a in padded_params if a is not None)
    cost = pl.CostEstimate(
        flops=2 * B * (d_in * hp + hp * hp + hp),
        transcendentals=0,
        bytes_accessed=4 * B * (d_in + 1) + weight_bytes,
    )

    semantics = (pltpu.CORE_PARALLEL,) if core_parallel else ("parallel",)

    out = pl.pallas_call(
        kernel,
        out_shape=jax.ShapeDtypeStruct((num_tiles, 1, tb), jnp.float32),
        grid=grid,
        in_specs=in_specs,
        # Lane-dense output: one (1, 1, TB) row per tile (unmasked wide stores
        # instead of TB/8 masked 1-lane stores + tiny write-back DMAs).
        out_specs=pl.BlockSpec((1, 1, tb), lambda i: (i, 0, 0)),
        compiler_params=pltpu.CompilerParams(
            dimension_semantics=semantics,
            vmem_limit_bytes=vmem_limit,
        ),
        cost_estimate=cost,
    )(*inputs)
    return out.reshape(-1)[:B].reshape(B, 1)


# ----------------------------------------------------------------------------
# Pure-JAX reference (uses the logical, unpadded f32 parameters)
# ----------------------------------------------------------------------------
def _reference(x, params):
    w1, b1, w2, b2, wl, bl = params
    h1 = jnp.maximum(x @ w1 + b1, 0.0)
    h2 = jnp.maximum(h1 @ w2 + b2, 0.0)
    return h2 @ wl + bl


if __name__ == "__main__":
    B, OBS, ACT, HIDDEN = 2, 16, 8, 32
    key = jax.random.PRNGKey(0)
    k_obs, k_act, k_par, k_par2 = jax.random.split(key, 4)

    obs = jax.random.normal(k_obs, (B, OBS), jnp.float32)
    actions = jax.random.normal(k_act, (B, ACT), jnp.float32)

    # bf16 MXU operands vs f32 reference -> relaxed tolerance.
    ATOL = RTOL = 1e-2

    # --- path with actions (obs ++ actions -> backbone -> last) -------------
    logical = init_params(k_par, OBS + ACT, HIDDEN)
    padded = prepare_params(logical, obs_dim=OBS, act_dim=ACT)

    values = jax.block_until_ready(critic_forward(obs, padded, actions))
    x_cat = jnp.concatenate([obs, actions.reshape(B, -1)], axis=1)
    ref = _reference(x_cat, logical)
    assert values.shape == (B, 1)
    assert jnp.allclose(values, ref, atol=ATOL, rtol=RTOL), (values, ref)

    # --- obs-only path (actions=None) ----------------------------------------
    logical_o = init_params(k_par2, OBS, HIDDEN)
    padded_o = prepare_params(logical_o, obs_dim=OBS, act_dim=0)

    values_o = jax.block_until_ready(critic_forward(obs, padded_o, None))
    ref_o = _reference(obs, logical_o)
    assert values_o.shape == (B, 1)
    assert jnp.allclose(values_o, ref_o, atol=ATOL, rtol=RTOL), (values_o, ref_o)

    # --- ragged, multi-tile batch (boundary tile without wrapper jnp.pad) ----
    B2 = 300
    obs2 = jax.random.normal(jax.random.PRNGKey(1), (B2, OBS), jnp.float32)
    act2 = jax.random.normal(jax.random.PRNGKey(2), (B2, ACT), jnp.float32)
    v2 = jax.block_until_ready(critic_forward(obs2, padded, act2, block_b=128))
    ref2 = _reference(jnp.concatenate([obs2, act2], axis=1), logical)
    assert v2.shape == (B2, 1)
    assert jnp.allclose(v2, ref2, atol=ATOL, rtol=RTOL)

    print("KERNEL_OK")
</pallas_src>

<mosaic_0001>
module attributes {stable_mosaic.version = 11 : i64} {
  func.func @_critic_kernel(%arg0: i32, %arg1: memref<8x16xf32, #tpu.memory_space<vmem>>, %arg2: memref<8x8xf32, #tpu.memory_space<vmem>>, %arg3: memref<16x128xbf16, #tpu.memory_space<vmem>>, %arg4: memref<8x128xbf16, #tpu.memory_space<vmem>>, %arg5: memref<1x128xf32, #tpu.memory_space<vmem>>, %arg6: memref<128x128xbf16, #tpu.memory_space<vmem>>, %arg7: memref<1x128xf32, #tpu.memory_space<vmem>>, %arg8: memref<1x128xf32, #tpu.memory_space<vmem>>, %arg9: memref<1x1xf32, #tpu.memory_space<smem>>, %arg10: memref<1x1x8xf32, #tpu.memory_space<vmem>>) attributes {dimension_semantics = [#tpu.dimension_semantics<parallel>], iteration_bounds = array<i64: 1>, scalar_prefetch = 0 : i64, scratch_operands = 0 : i64, tpu.core_type = #tpu.core_type<tc>, window_params = [{transform_indices = @transform_0, window_bounds = array<i64: 8, 16>}, {transform_indices = @transform_1, window_bounds = array<i64: 8, 8>}, {pipeline_mode = #tpu.pipeline_mode<synchronous>, transform_indices = @transform_2, window_bounds = array<i64: 16, 128>}, {pipeline_mode = #tpu.pipeline_mode<synchronous>, transform_indices = @transform_3, window_bounds = array<i64: 8, 128>}, {pipeline_mode = #tpu.pipeline_mode<synchronous>, transform_indices = @transform_4, window_bounds = array<i64: 1, 128>}, {pipeline_mode = #tpu.pipeline_mode<synchronous>, transform_indices = @transform_5, window_bounds = array<i64: 128, 128>}, {pipeline_mode = #tpu.pipeline_mode<synchronous>, transform_indices = @transform_6, window_bounds = array<i64: 1, 128>}, {pipeline_mode = #tpu.pipeline_mode<synchronous>, transform_indices = @transform_7, window_bounds = array<i64: 1, 128>}, {transform_indices = @transform_8, window_bounds = array<i64: 1, 1>}, {transform_indices = @transform_9, window_bounds = array<i64: 1, 1, 8>}]} {
    %c0 = arith.constant 0 : index
    %c0_0 = arith.constant 0 : index
    %0 = vector.load %arg1[%c0, %c0_0] : memref<8x16xf32, #tpu.memory_space<vmem>>, vector<8x16xf32>
    %1 = arith.truncf %0 : vector<8x16xf32> to vector<8x16xbf16>
    %c0_1 = arith.constant 0 : index
    %c0_2 = arith.constant 0 : index
    %2 = vector.load %arg3[%c0_1, %c0_2] : memref<16x128xbf16, #tpu.memory_space<vmem>>, vector<16x128xbf16>
    %cst = arith.constant dense<0.000000e+00> : vector<8x128xf32>
    %3 = tpu.matmul %1, %2, %cst {dimension_numbers = #tpu.dot_dimension_numbers<[1], [0], [0], [1], [0, 0, 1, 1], [], []>} : vector<8x16xbf16>, vector<16x128xbf16>, vector<8x128xf32> -> vector<8x128xf32>
    %c0_3 = arith.constant 0 : index
    %c0_4 = arith.constant 0 : index
    %4 = vector.load %arg2[%c0_3, %c0_4] : memref<8x8xf32, #tpu.memory_space<vmem>>, vector<8x8xf32>
    %5 = arith.truncf %4 : vector<8x8xf32> to vector<8x8xbf16>
    %c0_5 = arith.constant 0 : index
    %c0_6 = arith.constant 0 : index
    %6 = vector.load %arg4[%c0_5, %c0_6] : memref<8x128xbf16, #tpu.memory_space<vmem>>, vector<8x128xbf16>
    %cst_7 = arith.constant dense<0.000000e+00> : vector<8x128xf32>
    %7 = tpu.matmul %5, %6, %cst_7 {dimension_numbers = #tpu.dot_dimension_numbers<[1], [0], [0], [1], [0, 0, 1, 1], [], []>} : vector<8x8xbf16>, vector<8x128xbf16>, vector<8x128xf32> -> vector<8x128xf32>
    %8 = arith.addf %3, %7 : vector<8x128xf32>
    %c0_8 = arith.constant 0 : index
    %c0_9 = arith.constant 0 : index
    %9 = vector.load %arg5[%c0_8, %c0_9] : memref<1x128xf32, #tpu.memory_space<vmem>>, vector<1x128xf32>
    %10 = vector.broadcast %9 : vector<1x128xf32> to vector<8x128xf32>
    %11 = arith.addf %8, %10 : vector<8x128xf32>
    %cst_10 = arith.constant 0.000000e+00 : f32
    %12 = vector.broadcast %cst_10 : f32 to vector<8x128xf32>
    %13 = arith.maximumf %11, %12 : vector<8x128xf32>
    %14 = arith.truncf %13 : vector<8x128xf32> to vector<8x128xbf16>
    %c0_11 = arith.constant 0 : index
    %c0_12 = arith.constant 0 : index
    %15 = vector.load %arg6[%c0_11, %c0_12] : memref<128x128xbf16, #tpu.memory_space<vmem>>, vector<128x128xbf16>
    %cst_13 = arith.constant dense<0.000000e+00> : vector<8x128xf32>
    %16 = tpu.matmul %14, %15, %cst_13 {dimension_numbers = #tpu.dot_dimension_numbers<[1], [0], [0], [1], [0, 0, 1, 1], [], []>} : vector<8x128xbf16>, vector<128x128xbf16>, vector<8x128xf32> -> vector<8x128xf32>
    %c0_14 = arith.constant 0 : index
    %c0_15 = arith.constant 0 : index
    %17 = vector.load %arg7[%c0_14, %c0_15] : memref<1x128xf32, #tpu.memory_space<vmem>>, vector<1x128xf32>
    %18 = vector.broadcast %17 : vector<1x128xf32> to vector<8x128xf32>
    %19 = arith.addf %16, %18 : vector<8x128xf32>
    %cst_16 = arith.constant 0.000000e+00 : f32
    %20 = vector.broadcast %cst_16 : f32 to vector<8x128xf32>
    %21 = arith.maximumf %19, %20 : vector<8x128xf32>
    %c0_17 = arith.constant 0 : index
    %c0_18 = arith.constant 0 : index
    %22 = vector.load %arg8[%c0_17, %c0_18] : memref<1x128xf32, #tpu.memory_space<vmem>>, vector<1x128xf32>
    %23 = vector.broadcast %22 : vector<1x128xf32> to vector<8x128xf32>
    %24 = arith.mulf %21, %23 : vector<8x128xf32>
    %cst_19 = arith.constant dense<0.000000e+00> : vector<8xf32>
    %25 = vector.multi_reduction <add>, %24, %cst_19 [1] : vector<8x128xf32> to vector<8xf32>
    %c0_20 = arith.constant 0 : index
    %c0_21 = arith.constant 0 : index
    %26 = memref.load %arg9[%c0_20, %c0_21] : memref<1x1xf32, #tpu.memory_space<smem>>
    %27 = vector.broadcast %26 : f32 to vector<8xf32>
    %28 = arith.addf %25, %27 : vector<8xf32>
    %29 = vector.shape_cast %28 : vector<8xf32> to vector<1x1x8xf32>
    %c0_22 = arith.constant 0 : index
    %c0_23 = arith.constant 0 : index
    %c0_24 = arith.constant 0 : index
    %30 = vector.load %arg10[%c0_22, %c0_23, %c0_24] : memref<1x1x8xf32, #tpu.memory_space<vmem>>, vector<1x1x8xf32>
    tpu.vector_store %arg10[%c0_22, %c0_23, %c0_24], %29 {strides = array<i32>} : memref<1x1x8xf32, #tpu.memory_space<vmem>>, vector<1x1x8xf32>,
    return
  }
  func.func @transform_0(%arg0: i32) -> (i32, i32) {
    %c0_i32 = arith.constant 0 : i32
    %c0_i32_0 = arith.constant 0 : i32
    return %arg0, %c0_i32 : i32, i32
  }
  func.func @transform_1(%arg0: i32) -> (i32, i32) {
    %c0_i32 = arith.constant 0 : i32
    %c0_i32_0 = arith.constant 0 : i32
    return %arg0, %c0_i32 : i32, i32
  }
  func.func @transform_2(%arg0: i32) -> (i32, i32) {
    %c0_i32 = arith.constant 0 : i32
    %c0_i32_0 = arith.constant 0 : i32
    %c0_i32_1 = arith.constant 0 : i32
    return %c0_i32, %c0_i32_0 : i32, i32
  }
  func.func @transform_3(%arg0: i32) -> (i32, i32) {
    %c0_i32 = arith.constant 0 : i32
    %c0_i32_0 = arith.constant 0 : i32
    %c0_i32_1 = arith.constant 0 : i32
    return %c0_i32, %c0_i32_0 : i32, i32
  }
  func.func @transform_4(%arg0: i32) -> (i32, i32) {
    %c0_i32 = arith.constant 0 : i32
    %c0_i32_0 = arith.constant 0 : i32
    %c0_i32_1 = arith.constant 0 : i32
    return %c0_i32, %c0_i32_0 : i32, i32
  }
  func.func @transform_5(%arg0: i32) -> (i32, i32) {
    %c0_i32 = arith.constant 0 : i32
    %c0_i32_0 = arith.constant 0 : i32
    %c0_i32_1 = arith.constant 0 : i32
    return %c0_i32, %c0_i32_0 : i32, i32
  }
  func.func @transform_6(%arg0: i32) -> (i32, i32) {
    %c0_i32 = arith.constant 0 : i32
    %c0_i32_0 = arith.constant 0 : i32
    %c0_i32_1 = arith.constant 0 : i32
    return %c0_i32, %c0_i32_0 : i32, i32
  }
  func.func @transform_7(%arg0: i32) -> (i32, i32) {
    %c0_i32 = arith.constant 0 : i32
    %c0_i32_0 = arith.constant 0 : i32
    %c0_i32_1 = arith.constant 0 : i32
    return %c0_i32, %c0_i32_0 : i32, i32
  }
  func.func @transform_8(%arg0: i32) -> (i32, i32) {
    %c0_i32 = arith.constant 0 : i32
    %c0_i32_0 = arith.constant 0 : i32
    %c0_i32_1 = arith.constant 0 : i32
    return %c0_i32, %c0_i32_0 : i32, i32
  }
  func.func @transform_9(%arg0: i32) -> (i32, i32, i32) {
    %c0_i32 = arith.constant 0 : i32
    %c0_i32_0 = arith.constant 0 : i32
    %c0_i32_1 = arith.constant 0 : i32
    return %arg0, %c0_i32, %c0_i32_0 : i32, i32, i32
  }
}

</mosaic_0001>

<llo_original>
// kernel: tpu_custom_call.1
$region0: #{tpu_custom_call.1}
  #allocation0 [shape = 'u32[]', space=smem, size = 0x4, offset = 0x4, fixed_abs, tag = 'smem constant byte address 0x4 - core index']
  #allocation1 [shape = 'u32[144,128]{1,0:T(1,128)}', space=vmem, size = 0x12000, scoped, tag = 'internal scratch']
  #allocation2 [shape = 'f32[1,1]{1,0:T(1,128)S(6)}', space=smem, size = 0x200, scoped, tag = 'scoped memory for tpu_custom_call.1']
  %s0 = inlined_call_operand.vmem [shape: f32[2,16], index: 0, kind: input, shape index: {}]
  %s1 = inlined_call_operand.hbm [shape: f32[2,8], index: 1, kind: input, shape index: {}]
  %s2 = inlined_call_operand.vmem [shape: bf16[16,128], index: 2, kind: input, shape index: {}]
  %s3 = inlined_call_operand.vmem [shape: bf16[8,128], index: 3, kind: input, shape index: {}]
  %s4 = inlined_call_operand.vmem [shape: f32[1,128], index: 4, kind: input, shape index: {}]
  %s5 = inlined_call_operand.hbm [shape: bf16[128,128], index: 5, kind: input, shape index: {}]
  %s6 = inlined_call_operand.vmem [shape: f32[1,128], index: 6, kind: input, shape index: {}]
  %s7 = inlined_call_operand.vmem [shape: f32[1,128], index: 7, kind: input, shape index: {}]
  %s8 = inlined_call_operand.<no memory space> [shape: f32[1,1], index: 8, kind: input, shape index: {}]
  %s9 = inlined_call_operand.hbm [shape: f32[1,1,8], index: 9, kind: output, shape index: {}]
  %s10 = sld [smem:[#allocation0]]
  $region54: #{tpu_custom_call.1} parent=0
    _
  %s12 = ssub.s32 1, %s10
  %s13 = scalar_select 0, %s12, %s10
  %14 = sst [smem:[#allocation2]] %s8
  $region1: #{tpu_custom_call.1} parent=0
    #allocation3 [shape = 'u8[4096]{0}', space=vmem, size = 0x1000, scoped, tag = 'input window, operand 1, single buffered']
    #allocation4 [shape = 's32[1]{0}', space=sflag, size = 0x4, scoped, tag = 'scoped memory for tpu_custom_call.1']
    #allocation5 [shape = 's32[1]{0}', space=sflag, size = 0x4, scoped, tag = 'scoped memory for tpu_custom_call.1']
    #allocation6 [shape = 'u8[32768]{0}', space=vmem, size = 0x8000, scoped, tag = 'input window, operand 5, single buffered']
    #allocation7 [shape = 's32[1]{0}', space=sflag, size = 0x4, scoped, tag = 'scoped memory for tpu_custom_call.1']
    #allocation8 [shape = 'u8[512]{0}', space=vmem, size = 0x400, scoped, tag = 'output window, operand 0, single buffered']
    %15 = vsyncpa [#allocation4], 0
    %16 = vsyncpa [#allocation7], 0
    %17 = vsyncpa [#allocation5], 0
    // Predicated region
    $region2: #{tpu_custom_call.1} parent=1 // pred_check
      _
    $region3: #{tpu_custom_call.1} parent=1 // pred_check_branch
      %19 = sbr.rel (0) target = $region5
    $region4: #{tpu_custom_call.1} parent=1 // pred_region
      _
    $region5: #{tpu_custom_call.1} parent=1 // pred_fallthru
      _
    // Predicated region
    $region6: #{tpu_custom_call.1} parent=1 // pred_check
      _
    $region7: #{tpu_custom_call.1} parent=1 // pred_check_branch
      %21 = sbr.rel (0) target = $region9
    $region8: #{tpu_custom_call.1} parent=1 // pred_region
      %s23 = ssub.s32 128, 32
      %24 = vsyncadd [#allocation4], %s23
      %s25 = sshll.u32 [#allocation3], 4
      %s26 = int_to_ptr.vmem [resolvable:$true] %s25
      %31 = dma.hbm_to_vmem [thread:$0]  %s1, 32, %s26, [#allocation4], 32, 32, 2
    $region9: #{tpu_custom_call.1} parent=1 // pred_fallthru
      _
    // Predicated region
    $region10: #{tpu_custom_call.1} parent=1 // pred_check
      _
    $region11: #{tpu_custom_call.1} parent=1 // pred_check_branch
      %33 = sbr.rel (0) target = $region13
    $region12: #{tpu_custom_call.1} parent=1 // pred_region
      _
    $region13: #{tpu_custom_call.1} parent=1 // pred_fallthru
      _
    // Predicated region
    $region14: #{tpu_custom_call.1} parent=1 // pred_check
      _
    $region15: #{tpu_custom_call.1} parent=1 // pred_check_branch
      %35 = sbr.rel (0) target = $region17
    $region16: #{tpu_custom_call.1} parent=1 // pred_region
      _
    $region17: #{tpu_custom_call.1} parent=1 // pred_fallthru
      _
    // Predicated region
    $region18: #{tpu_custom_call.1} parent=1 // pred_check
      _
    $region19: #{tpu_custom_call.1} parent=1 // pred_check_branch
      %37 = sbr.rel (0) target = $region21
    $region20: #{tpu_custom_call.1} parent=1 // pred_region
      _
    $region21: #{tpu_custom_call.1} parent=1 // pred_fallthru
      _
    // Predicated region
    $region22: #{tpu_custom_call.1} parent=1 // pred_check
      _
    $region23: #{tpu_custom_call.1} parent=1 // pred_check_branch
      %39 = sbr.rel (0) target = $region25
    $region24: #{tpu_custom_call.1} parent=1 // pred_region
      %s41 = ssub.s32 1024, 1024
      %42 = vsyncadd [#allocation7], %s41
      %s43 = sshll.u32 [#allocation6], 4
      %s44 = int_to_ptr.vmem [resolvable:$true] %s43
      %49 = dma.hbm_to_vmem [thread:$0]  %s5, 1024, %s44, [#allocation7], 64, 64, 4
    $region25: #{tpu_custom_call.1} parent=1 // pred_fallthru
      _
    // Predicated region
    $region26: #{tpu_custom_call.1} parent=1 // pred_check
      _
    $region27: #{tpu_custom_call.1} parent=1 // pred_check_branch
      %51 = sbr.rel (0) target = $region29
    $region28: #{tpu_custom_call.1} parent=1 // pred_region
      _
    $region29: #{tpu_custom_call.1} parent=1 // pred_fallthru
      _
    // Predicated region
    $region30: #{tpu_custom_call.1} parent=1 // pred_check
      _
    $region31: #{tpu_custom_call.1} parent=1 // pred_check_branch
      %53 = sbr.rel (0) target = $region33
    $region32: #{tpu_custom_call.1} parent=1 // pred_region
      _
    $region33: #{tpu_custom_call.1} parent=1 // pred_fallthru
      _
    // Predicated region
    $region34: #{tpu_custom_call.1} parent=1 // pred_check
      _
    $region35: #{tpu_custom_call.1} parent=1 // pred_check_branch
      %55 = sbr.rel (0) target = $region37
    $region36: #{tpu_custom_call.1} parent=1 // pred_region
      _
    $region37: #{tpu_custom_call.1} parent=1 // pred_fallthru
      _
    // Predicated region
    $region38: #{tpu_custom_call.1} parent=1 // pred_check
      _
    $region39: #{tpu_custom_call.1} parent=1 // pred_check_branch
      %57 = sbr.rel (0) target = $region41
    $region40: #{tpu_custom_call.1} parent=1 // pred_region
      %58 = dma.done [#allocation4], 128
    $region41: #{tpu_custom_call.1} parent=1 // pred_fallthru
      _
    // Predicated region
    $region42: #{tpu_custom_call.1} parent=1 // pred_check
      _
    $region43: #{tpu_custom_call.1} parent=1 // pred_check_branch
      %60 = sbr.rel (0) target = $region45
    $region44: #{tpu_custom_call.1} parent=1 // pred_region
      %61 = dma.done [#allocation7], 1024
    $region45: #{tpu_custom_call.1} parent=1 // pred_fallthru
      _
    %v63 = vld [vmem:[%s0] sm:$0xff]
    %v64 = vpack.c.bf16 %v63, %v63
    %v65 = vld [vmem:[%s2] sm:$0xf]
    %v66 = vld [vmem:[%s2 + $0x4] sm:$0xf]
    %v67 = vld [vmem:[#allocation3] sm:$0xff]
    %v68 = vpack.c.bf16 %v67, %v67
    %v69 = vld [vmem:[%s3] sm:$0xf]
    %vm70 = vcmask 64512
    %v72 = vsel %vm70, %v68, 0
    %vm74 = vcmask 1043456
    %v76 = vsel %vm74, %v69, 0
    %78 = vmatprep.subr.bf16.mxu0 0
    %79 = vmatpush1.bf16.msra.mxu0 %v76
    %80 = vmatprep.subr.bf16.mxu0 0
    %81 = vmatpush1.bf16.msra.mxu0 0
    %82 = vmatprep.subr.bf16.mxu0 0
    %83 = vmatpush1.bf16.msra.mxu0 0
    %84 = vmatprep.subr.bf16.mxu0 0
    %85 = vmatpush1.bf16.msra.mxu0 0
    %86 = vmatprep.subr.bf16.mxu0 0
    %87 = vmatpush1.bf16.msra.mxu0 0
    %88 = vmatprep.subr.bf16.mxu0 0
    %89 = vmatpush1.bf16.msra.mxu0 0
    %90 = vmatprep.subr.bf16.mxu0 0
    %91 = vmatpush1.bf16.msra.mxu0 0
    %92 = vmatprep.subr.bf16.mxu0 0
    %93 = vmatpush1.bf16.msra.mxu0 0
    %94 = vmatprep.subr.bf16.mxu0 0
    %95 = vmatpush1.bf16.msra.mxu0 0
    %96 = vmatprep.subr.bf16.mxu0 0
    %97 = vmatpush1.bf16.msra.mxu0 0
    %98 = vmatprep.subr.bf16.mxu0 0
    %99 = vmatpush1.bf16.msra.mxu0 0
    %100 = vmatprep.subr.bf16.mxu0 0
    %101 = vmatpush1.bf16.msra.mxu0 0
    %102 = vmatprep.subr.bf16.mxu0 0
    %103 = vmatpush1.bf16.msra.mxu0 0
    %104 = vmatprep.subr.bf16.mxu0 0
    %105 = vmatpush1.bf16.msra.mxu0 0
    %106 = vmatprep.subr.bf16.mxu0 0
    %107 = vmatpush1.bf16.msra.mxu0 0
    %108 = vmatprep.subr.bf16.mxu0 0
    %109 = vmatpush1.bf16.msra.mxu0 0
    %110 = vmatprep.mubr.bf16.mxu0 0
    %111 = vmatmul.mubr.bf16.gmra.mrb[0].mxu0 %v72
    %v112 = vpop.f32.mrb[0].mxu0
    %v113 = vadd.f32 0.0, %v112
    %v114 = vpop.f32.mrb[0].mxu0
    %v115 = vpop.f32.mrb[0].mxu0
    %v116 = vpop.f32.mrb[0].mxu0
    %117 = vdwg.mxu0
    %v120 = vunpack.c.l.b16 %v65
    %v121 = vunpack.c.l.b16 %v66
    %v122 = vpack.c.b16 %v121, %v120
    %vm124 = vcmask 130048
    %v126 = vsel %vm124, %v64, 0
    %128 = vmatprep.subr.bf16.mxu0 0
    %129 = vmatpush1.bf16.msra.mxu0 %v122
    %130 = vmatprep.subr.bf16.mxu0 0
    %131 = vmatpush1.bf16.msra.mxu0 0
    %132 = vmatprep.subr.bf16.mxu0 0
    %133 = vmatpush1.bf16.msra.mxu0 0
    %134 = vmatprep.subr.bf16.mxu0 0
    %135 = vmatpush1.bf16.msra.mxu0 0
    %136 = vmatprep.subr.bf16.mxu0 0
    %137 = vmatpush1.bf16.msra.mxu0 0
    %138 = vmatprep.subr.bf16.mxu0 0
    %139 = vmatpush1.bf16.msra.mxu0 0
    %140 = vmatprep.subr.bf16.mxu0 0
    %141 = vmatpush1.bf16.msra.mxu0 0
    %142 = vmatprep.subr.bf16.mxu0 0
    %143 = vmatpush1.bf16.msra.mxu0 0
    %144 = vmatprep.subr.bf16.mxu0 0
    %145 = vmatpush1.bf16.msra.mxu0 0
    %146 = vmatprep.subr.bf16.mxu0 0
    %147 = vmatpush1.bf16.msra.mxu0 0
    %148 = vmatprep.subr.bf16.mxu0 0
    %149 = vmatpush1.bf16.msra.mxu0 0
    %150 = vmatprep.subr.bf16.mxu0 0
    %151 = vmatpush1.bf16.msra.mxu0 0
    %152 = vmatprep.subr.bf16.mxu0 0
    %153 = vmatpush1.bf16.msra.mxu0 0
    %154 = vmatprep.subr.bf16.mxu0 0
    %155 = vmatpush1.bf16.msra.mxu0 0
    %156 = vmatprep.subr.bf16.mxu0 0
    %157 = vmatpush1.bf16.msra.mxu0 0
    %158 = vmatprep.subr.bf16.mxu0 0
    %159 = vmatpush1.bf16.msra.mxu0 0
    %160 = vmatprep.mubr.bf16.mxu0 0
    %161 = vmatmul.mubr.bf16.gmra.mrb[0].mxu0 %v126
    %v162 = vpop.f32.mrb[0].mxu0
    %v163 = vadd.f32 %v113, %v162
    %v164 = vpop.f32.mrb[0].mxu0
    %v165 = vpop.f32.mrb[0].mxu0
    %v166 = vpop.f32.mrb[0].mxu0
    %167 = vdwg.mxu0
    %v168 = vld [vmem:[%s4] sm:$0x1]
    %v170 = vlaneseq
    %v171 = vshrl.u32 %v170, 7
    %v172 = vsub.s32 0, %v171
    %v173 = vrot.slane %v168, %v172
    %v175 = vadd.f32 %v163, %v173
    %v176 = vmax.f32 %v175, 0.0
    %v177 = vpack.c.bf16 %v176, %v176
    %v178 = vld [vmem:[#allocation6] sm:$0xf]
    %v179 = vld [vmem:[#allocation6 + $0x4] sm:$0xf]
    %v180 = vld [vmem:[#allocation6 + $0x8] sm:$0xf]
    %v181 = vld [vmem:[#allocation6 + $0xc] sm:$0xf]
    %v182 = vld [vmem:[#allocation6 + $0x10] sm:$0xf]
    %v183 = vld [vmem:[#allocation6 + $0x14] sm:$0xf]
    %v184 = vld [vmem:[#allocation6 + $0x18] sm:$0xf]
    %v185 = vld [vmem:[#allocation6 + $0x1c] sm:$0xf]
    %v186 = vld [vmem:[#allocation6 + $0x20] sm:$0xf]
    %v187 = vld [vmem:[#allocation6 + $0x24] sm:$0xf]
    %v188 = vld [vmem:[#allocation6 + $0x28] sm:$0xf]
    %v189 = vld [vmem:[#allocation6 + $0x2c] sm:$0xf]
    %v190 = vld [vmem:[#allocation6 + $0x30] sm:$0xf]
    %v191 = vld [vmem:[#allocation6 + $0x34] sm:$0xf]
    %v192 = vld [vmem:[#allocation6 + $0x38] sm:$0xf]
    %v193 = vld [vmem:[#allocation6 + $0x3c] sm:$0xf]
    %v194 = vld [vmem:[%s6] sm:$0x1]
    %v196 = vlaneseq
    %v197 = vshrl.u32 %v196, 7
    %v198 = vsub.s32 0, %v197
    %v199 = vrot.slane %v194, %v198
    %v217 = vunpack.c.l.b16 %v178
    %v218 = vunpack.c.l.b16 %v179
    %v219 = vunpack.c.l.b16 %v180
    %v220 = vunpack.c.l.b16 %v181
    %v221 = vunpack.c.l.b16 %v182
    %v222 = vunpack.c.l.b16 %v183
    %v223 = vunpack.c.l.b16 %v184
    %v224 = vunpack.c.l.b16 %v185
    %v225 = vunpack.c.l.b16 %v186
    %v226 = vunpack.c.l.b16 %v187
    %v227 = vunpack.c.l.b16 %v188
    %v228 = vunpack.c.l.b16 %v189
    %v229 = vunpack.c.l.b16 %v190
    %v230 = vunpack.c.l.b16 %v191
    %v231 = vunpack.c.l.b16 %v192
    %v232 = vunpack.c.l.b16 %v193
    %v233 = vpack.c.b16 %v218, %v217
    %v234 = vpack.c.b16 %v220, %v219
    %v235 = vpack.c.b16 %v222, %v221
    %v236 = vpack.c.b16 %v224, %v223
    %v237 = vpack.c.b16 %v226, %v225
    %v238 = vpack.c.b16 %v228, %v227
    %v239 = vpack.c.b16 %v230, %v229
    %v240 = vpack.c.b16 %v232, %v231
    %249 = vmatprep.subr.bf16.mxu0 0
    %250 = vmatpush1.bf16.msra.mxu0 %v233
    %251 = vmatprep.subr.bf16.mxu0 0
    %252 = vmatpush1.bf16.msra.mxu0 %v234
    %253 = vmatprep.subr.bf16.mxu0 0
    %254 = vmatpush1.bf16.msra.mxu0 %v235
    %255 = vmatprep.subr.bf16.mxu0 0
    %256 = vmatpush1.bf16.msra.mxu0 %v236
    %257 = vmatprep.subr.bf16.mxu0 0
    %258 = vmatpush1.bf16.msra.mxu0 %v237
    %259 = vmatprep.subr.bf16.mxu0 0
    %260 = vmatpush1.bf16.msra.mxu0 %v238
    %261 = vmatprep.subr.bf16.mxu0 0
    %262 = vmatpush1.bf16.msra.mxu0 %v239
    %263 = vmatprep.subr.bf16.mxu0 0
    %264 = vmatpush1.bf16.msra.mxu0 %v240
    %265 = vmatprep.subr.bf16.mxu0 0
    %266 = vmatpush1.bf16.msra.mxu0 0
    %267 = vmatprep.subr.bf16.mxu0 0
    %268 = vmatpush1.bf16.msra.mxu0 0
    %269 = vmatprep.subr.bf16.mxu0 0
    %270 = vmatpush1.bf16.msra.mxu0 0
    %271 = vmatprep.subr.bf16.mxu0 0
    %272 = vmatpush1.bf16.msra.mxu0 0
    %273 = vmatprep.subr.bf16.mxu0 0
    %274 = vmatpush1.bf16.msra.mxu0 0
    %275 = vmatprep.subr.bf16.mxu0 0
    %276 = vmatpush1.bf16.msra.mxu0 0
    %277 = vmatprep.subr.bf16.mxu0 0
    %278 = vmatpush1.bf16.msra.mxu0 0
    %279 = vmatprep.subr.bf16.mxu0 0
    %280 = vmatpush1.bf16.msra.mxu0 0
    %281 = vmatprep.mubr.bf16.mxu0 0
    %282 = vmatmul.mubr.bf16.gmra.mrb[0].mxu0 %v177
    %v283 = vpop.f32.mrb[0].mxu0
    %v284 = vadd.f32 %v199, %v283
    %v285 = vpop.f32.mrb[0].mxu0
    %v286 = vpop.f32.mrb[0].mxu0
    %v287 = vpop.f32.mrb[0].mxu0
    %288 = vdwg.mxu0
    %v289 = vmax.f32 %v284, 0.0
    %v290 = vld [vmem:[%s7] sm:$0x1]
    %v292 = vlaneseq
    %v293 = vshrl.u32 %v292, 7
    %v294 = vsub.s32 0, %v293
    %v295 = vrot.slane %v290, %v294
    %v297 = vmul.f32 %v289, %v295
    %298 = vadd.xlane.f32.xlu0 %v297
    %v299 = vpop.xlane.xlu0 %298
    %s300 = sld [smem:[#allocation2]]
    %v301 = vstv %s300
    %v302 = vadd.f32 %v299, %v301
    %v304 = vlaneseq
    %v305 = vand.u32 %v304, 127
    %v306 = vlaneseq
    %v307 = vshrl.u32 %v306, 7
    %v308 = vsub.s32 %v305, %v307
    %v309 = vrot.slane %v302, %v308
    %vm311 = vcmask 57344
    %312 = vst.msk [vmem:[#allocation8] sm:$0x1] %vm311, %v309
    // Predicated region
    $region46: #{tpu_custom_call.1} parent=1 // pred_check
      _
    $region47: #{tpu_custom_call.1} parent=1 // pred_check_branch
      %314 = sbr.rel (0) target = $region49
    $region48: #{tpu_custom_call.1} parent=1 // pred_region
      %s316 = ssub.s32 16, 16
      %317 = vsyncadd [#allocation5], %s316
      %s319 = sshll.u32 [#allocation8], 4
      %s320 = int_to_ptr.vmem [resolvable:$true] %s319
      %322 = dma.vmem_to_hbm [thread:$0]  %s320, 16, %s9, [#allocation5]
    $region49: #{tpu_custom_call.1} parent=1 // pred_fallthru
      _
    // Predicated region
    $region50: #{tpu_custom_call.1} parent=1 // pred_check
      _
    $region51: #{tpu_custom_call.1} parent=1 // pred_check_branch
      %324 = sbr.rel (0) target = $region53
    $region52: #{tpu_custom_call.1} parent=1 // pred_region
      %325 = dma.done [#allocation5], 16
    $region53: #{tpu_custom_call.1} parent=1 // pred_fallthru
      _
    %326 = vsyncpa [#allocation4], 1
    %327 = vsyncpa [#allocation7], 1
    %328 = vsyncpa [#allocation5], 1

</llo_original>
